<compile_context>
chip_gen: v7x
topology: tpu7x:2x2x1
jax: 0.10.0
libtpu: 0.0.40
codegen_flags: <defaults>
</compile_context>

<pallas_src>
import jax
import jax.numpy as jnp
import numpy as np
from jax.experimental import pallas as pl
from jax.experimental.pallas import tpu as pltpu


def _round_up(x, m):
    return (x + m - 1) // m * m


# ----------------------------- Pallas kernels ------------------------------ #

def _linear_relu_kernel(x_ref, w_ref, b_ref, o_ref):
    # o = relu(x @ W + b)   -- MXU matmul + VPU max
    y = jnp.dot(x_ref[...], w_ref[...], preferred_element_type=jnp.float32)
    y = y + b_ref[...]
    o_ref[...] = jnp.maximum(y, 0.0).astype(o_ref.dtype)


def linear_relu(x, w_t, b, *, tm=256):
    """x: (N, Ep) f32, w_t: (Ep, Hp) f32, b: (Hp,) f32 -> (N, Hp) f32.

    Ep/Hp are assumed 128-padded by the caller.  Rows are tiled with a 1-D
    parallel grid; row count is zero-padded up to the tile size.
    """
    n, e = x.shape
    h = w_t.shape[1]
    tm = min(tm, _round_up(max(n, 1), 8))      # multiple of 8 (f32 sublanes)
    n_pad = _round_up(n, tm)
    if n_pad != n:
        x = jnp.pad(x, ((0, n_pad - n), (0, 0)))

    out = pl.pallas_call(
        _linear_relu_kernel,
        out_shape=jax.ShapeDtypeStruct((n_pad, h), jnp.float32),
        grid=(n_pad // tm,),
        in_specs=[
            pl.BlockSpec((tm, e), lambda i: (i, 0)),   # row tile of activations
            pl.BlockSpec((e, h), lambda i: (0, 0)),    # weights resident
            pl.BlockSpec((1, h), lambda i: (0, 0)),    # bias resident
        ],
        out_specs=pl.BlockSpec((tm, h), lambda i: (i, 0)),
        compiler_params=pltpu.CompilerParams(
            dimension_semantics=("parallel",)),
    )(x, w_t, b.reshape(1, h))
    return out[:n]


def _pair_clf_kernel(a_ref, b_ref, w_ref, bias_ref, o_ref):
    # o = sigmoid((a * b) @ W_all + bias_all)   -- VPU product, wide MXU matmul,
    # lane-dense (tp, 128) store.
    prod = a_ref[...] * b_ref[...]
    logits = jnp.dot(prod, w_ref[...], preferred_element_type=jnp.float32)
    o_ref[...] = jax.nn.sigmoid(logits + bias_ref[...]).astype(o_ref.dtype)


def pair_clf_fused(a, b, w_all, bias_all, *, tp=256):
    """a, b: (P, Hp) f32; w_all: (Hp, 128) f32; bias_all: (1, 128) f32.

    Returns (P, 128) sigmoid scores; the caller picks the valid column per
    classifier segment.  Pairs are row-tiled with a parallel grid.
    """
    p, hp = a.shape
    nc = w_all.shape[1]
    tp = min(tp, _round_up(max(p, 1), 8))
    p_pad = _round_up(p, tp)
    if p_pad != p:
        a = jnp.pad(a, ((0, p_pad - p), (0, 0)))
        b = jnp.pad(b, ((0, p_pad - p), (0, 0)))

    out = pl.pallas_call(
        _pair_clf_kernel,
        out_shape=jax.ShapeDtypeStruct((p_pad, nc), jnp.float32),
        grid=(p_pad // tp,),
        in_specs=[
            pl.BlockSpec((tp, hp), lambda i: (i, 0)),
            pl.BlockSpec((tp, hp), lambda i: (i, 0)),
            pl.BlockSpec((hp, nc), lambda i: (0, 0)),
            pl.BlockSpec((1, nc), lambda i: (0, 0)),
        ],
        out_specs=pl.BlockSpec((tp, nc), lambda i: (i, 0)),
        compiler_params=pltpu.CompilerParams(
            dimension_semantics=("parallel",)),
    )(a, b, w_all, bias_all)
    return out[:p]


# ----------------------------- Model wrapper ------------------------------- #

def init_mpdp_params(key, n_prot, n_drug, hidden_dim, seq_emb_dim):
    """Deterministic init mirroring MPDP.init_parameters()."""
    y = 1.0 / np.sqrt(seq_emb_dim)
    y2 = 1.0 / np.sqrt(hidden_dim)
    ks = jax.random.split(key, 7)
    uni = lambda k, shape, lim: jax.random.uniform(
        k, shape, jnp.float32, minval=-lim, maxval=lim)
    return {
        "pemb": uni(ks[0], (n_prot, seq_emb_dim), y),
        "demb": uni(ks[1], (n_drug, seq_emb_dim), y),
        # linear weights stored transposed: (in, out)
        "plinear_w_t": uni(ks[2], (seq_emb_dim, hidden_dim), y),
        "plinear_b": jnp.zeros((hidden_dim,), jnp.float32),
        "dlinear_w_t": uni(ks[3], (seq_emb_dim, hidden_dim), y),
        "dlinear_b": jnp.zeros((hidden_dim,), jnp.float32),
        # classifier weights stored as column vectors (hidden, 1)
        "dti_w": uni(ks[4], (hidden_dim, 1), y2),
        "dti_b": jnp.zeros((1,), jnp.float32),
        "ppi_w": uni(ks[5], (hidden_dim, 1), y2),
        "ppi_b": jnp.zeros((1,), jnp.float32),
        "ddi_w": uni(ks[6], (hidden_dim, 1), y2),
        "ddi_b": jnp.zeros((1,), jnp.float32),
    }


@jax.jit
def mpdp_forward(params, pindex, dindex, dti_pairs, ppi_pairs, ddi_pairs):
    e = params["plinear_w_t"].shape[0]
    h = params["plinear_w_t"].shape[1]
    ep = _round_up(e, 128)
    hp = _round_up(h, 128)

    # Embedding lookups (glue: plain gathers), feature dim zero-padded to 128x.
    pemb = jnp.pad(params["pemb"][pindex], ((0, 0), (0, ep - e)))   # (Np, Ep)
    demb = jnp.pad(params["demb"][dindex], ((0, 0), (0, ep - e)))   # (Nd, Ep)

    # Zero-pad the linear weights/bias to 128-aligned feature dims.  Padded
    # output columns are exactly zero after relu (zero weight cols, zero bias),
    # and the padded classifier rows are zero, so the math is unchanged.
    pw = jnp.pad(params["plinear_w_t"], ((0, ep - e), (0, hp - h)))
    dw = jnp.pad(params["dlinear_w_t"], ((0, ep - e), (0, hp - h)))
    pb = jnp.pad(params["plinear_b"], (0, hp - h))
    db = jnp.pad(params["dlinear_b"], (0, hp - h))

    # Hidden states via row-tiled Pallas kernel: relu(emb @ W + b) -> (N, Hp)
    pghid = linear_relu(pemb, pw, pb)
    dghid = linear_relu(demb, dw, db)

    # Pack the three (H,1) classifier columns into one (Hp,128) weight matrix
    # (columns 0/1/2 = dti/ppi/ddi, rest zero) so one wide matmul serves all
    # three classifiers with a lane-dense output.
    nc = 128
    w_all = jnp.zeros((hp, nc), jnp.float32)
    w_all = w_all.at[:h, 0].set(params["dti_w"][:, 0])
    w_all = w_all.at[:h, 1].set(params["ppi_w"][:, 0])
    w_all = w_all.at[:h, 2].set(params["ddi_w"][:, 0])
    b_all = jnp.zeros((1, nc), jnp.float32)
    b_all = b_all.at[0, 0].set(params["dti_b"][0])
    b_all = b_all.at[0, 1].set(params["ppi_b"][0])
    b_all = b_all.at[0, 2].set(params["ddi_b"][0])

    # Pair gathers (glue), concatenated so all three classifiers share one
    # fused Pallas launch.
    n_dti = dti_pairs.shape[0]
    n_ppi = ppi_pairs.shape[0]
    a_rows = jnp.concatenate([dghid[dti_pairs[:, 0]],
                              pghid[ppi_pairs[:, 0]],
                              dghid[ddi_pairs[:, 0]]], axis=0)
    b_rows = jnp.concatenate([pghid[dti_pairs[:, 1]],
                              pghid[ppi_pairs[:, 1]],
                              dghid[ddi_pairs[:, 1]]], axis=0)

    scores = pair_clf_fused(a_rows, b_rows, w_all, b_all)   # (P_total, 128)
    dti = scores[:n_dti, 0]
    ppi = scores[n_dti:n_dti + n_ppi, 1]
    ddi = scores[n_dti + n_ppi:, 2]
    return jnp.squeeze(dti), jnp.squeeze(ppi), jnp.squeeze(ddi)


def mpdp_forward_ref(params, pindex, dindex, dti_pairs, ppi_pairs, ddi_pairs):
    """Pure-JAX reference for verification."""
    pemb = params["pemb"][pindex]
    demb = params["demb"][dindex]
    pghid = jax.nn.relu(pemb @ params["plinear_w_t"] + params["plinear_b"])
    dghid = jax.nn.relu(demb @ params["dlinear_w_t"] + params["dlinear_b"])
    sig = jax.nn.sigmoid
    dti = sig((dghid[dti_pairs[:, 0]] * pghid[dti_pairs[:, 1]]) @ params["dti_w"]
              + params["dti_b"])
    ppi = sig((pghid[ppi_pairs[:, 0]] * pghid[ppi_pairs[:, 1]]) @ params["ppi_w"]
              + params["ppi_b"])
    ddi = sig((dghid[ddi_pairs[:, 0]] * dghid[ddi_pairs[:, 1]]) @ params["ddi_w"]
              + params["ddi_b"])
    return jnp.squeeze(dti), jnp.squeeze(ppi), jnp.squeeze(ddi)


# --------------------------------- main ------------------------------------ #

if __name__ == "__main__":
    # Small synthetic shapes consistent with the module.
    n_prot, n_drug = 8, 6
    hidden_dim, seq_emb_dim = 32, 64

    key = jax.random.PRNGKey(0)
    params = init_mpdp_params(key, n_prot, n_drug, hidden_dim, seq_emb_dim)

    # Index tensors: score all entities.
    pindex = jnp.arange(n_prot, dtype=jnp.int32)
    dindex = jnp.arange(n_drug, dtype=jnp.int32)

    # Pair lists: column 0 indexes rows of the first hidden matrix,
    # column 1 indexes rows of the second (as in the PyTorch forward).
    k1, k2, k3, k4, k5, k6 = jax.random.split(jax.random.PRNGKey(1), 6)
    dti_pairs = jnp.stack(
        [jax.random.randint(k1, (5,), 0, n_drug),
         jax.random.randint(k2, (5,), 0, n_prot)], axis=1).astype(jnp.int32)
    ppi_pairs = jnp.stack(
        [jax.random.randint(k3, (4,), 0, n_prot),
         jax.random.randint(k4, (4,), 0, n_prot)], axis=1).astype(jnp.int32)
    ddi_pairs = jnp.stack(
        [jax.random.randint(k5, (3,), 0, n_drug),
         jax.random.randint(k6, (3,), 0, n_drug)], axis=1).astype(jnp.int32)

    out = mpdp_forward(params, pindex, dindex, dti_pairs, ppi_pairs, ddi_pairs)
    out = jax.block_until_ready(out)

    ref = mpdp_forward_ref(params, pindex, dindex, dti_pairs, ppi_pairs, ddi_pairs)
    for o, r in zip(out, ref):
        np.testing.assert_allclose(np.asarray(o), np.asarray(r),
                                   rtol=1e-5, atol=1e-5)

    print("KERNEL_OK")
</pallas_src>

<mosaic_0001>
module attributes {stable_mosaic.version = 11 : i64} {
  func.func @_linear_relu_kernel(%arg0: i32, %arg1: memref<8x128xf32, #tpu.memory_space<vmem>>, %arg2: memref<128x128xf32, #tpu.memory_space<vmem>>, %arg3: memref<1x128xf32, #tpu.memory_space<vmem>>, %arg4: memref<8x128xf32, #tpu.memory_space<vmem>>) attributes {dimension_semantics = [#tpu.dimension_semantics<parallel>], iteration_bounds = array<i64: 1>, scalar_prefetch = 0 : i64, scratch_operands = 0 : i64, tpu.core_type = #tpu.core_type<tc>, window_params = [{transform_indices = @transform_0, window_bounds = array<i64: 8, 128>}, {pipeline_mode = #tpu.pipeline_mode<synchronous>, transform_indices = @transform_1, window_bounds = array<i64: 128, 128>}, {pipeline_mode = #tpu.pipeline_mode<synchronous>, transform_indices = @transform_2, window_bounds = array<i64: 1, 128>}, {transform_indices = @transform_3, window_bounds = array<i64: 8, 128>}]} {
    %c0 = arith.constant 0 : index
    %c0_0 = arith.constant 0 : index
    %0 = vector.load %arg1[%c0, %c0_0] : memref<8x128xf32, #tpu.memory_space<vmem>>, vector<8x128xf32>
    %c0_1 = arith.constant 0 : index
    %c0_2 = arith.constant 0 : index
    %1 = vector.load %arg2[%c0_1, %c0_2] : memref<128x128xf32, #tpu.memory_space<vmem>>, vector<128x128xf32>
    %cst = arith.constant dense<0.000000e+00> : vector<8x128xf32>
    %2 = tpu.matmul %0, %1, %cst {dimension_numbers = #tpu.dot_dimension_numbers<[1], [0], [0], [1], [0, 0, 1, 1], [], []>} : vector<8x128xf32>, vector<128x128xf32>, vector<8x128xf32> -> vector<8x128xf32>
    %c0_3 = arith.constant 0 : index
    %c0_4 = arith.constant 0 : index
    %3 = vector.load %arg3[%c0_3, %c0_4] : memref<1x128xf32, #tpu.memory_space<vmem>>, vector<1x128xf32>
    %4 = vector.broadcast %3 : vector<1x128xf32> to vector<8x128xf32>
    %5 = arith.addf %2, %4 : vector<8x128xf32>
    %cst_5 = arith.constant 0.000000e+00 : f32
    %6 = vector.broadcast %cst_5 : f32 to vector<8x128xf32>
    %7 = arith.maximumf %5, %6 : vector<8x128xf32>
    %c0_6 = arith.constant 0 : index
    %c0_7 = arith.constant 0 : index
    %8 = vector.load %arg4[%c0_6, %c0_7] : memref<8x128xf32, #tpu.memory_space<vmem>>, vector<8x128xf32>
    tpu.vector_store %arg4[%c0_6, %c0_7], %7 {strides = array<i32>} : memref<8x128xf32, #tpu.memory_space<vmem>>, vector<8x128xf32>,
    return
  }
  func.func @transform_0(%arg0: i32) -> (i32, i32) {
    %c0_i32 = arith.constant 0 : i32
    %c0_i32_0 = arith.constant 0 : i32
    return %arg0, %c0_i32 : i32, i32
  }
  func.func @transform_1(%arg0: i32) -> (i32, i32) {
    %c0_i32 = arith.constant 0 : i32
    %c0_i32_0 = arith.constant 0 : i32
    %c0_i32_1 = arith.constant 0 : i32
    return %c0_i32, %c0_i32_0 : i32, i32
  }
  func.func @transform_2(%arg0: i32) -> (i32, i32) {
    %c0_i32 = arith.constant 0 : i32
    %c0_i32_0 = arith.constant 0 : i32
    %c0_i32_1 = arith.constant 0 : i32
    return %c0_i32, %c0_i32_0 : i32, i32
  }
  func.func @transform_3(%arg0: i32) -> (i32, i32) {
    %c0_i32 = arith.constant 0 : i32
    %c0_i32_0 = arith.constant 0 : i32
    return %arg0, %c0_i32 : i32, i32
  }
}

module attributes {stable_mosaic.version = 11 : i64} {
  func.func @_pair_clf_kernel(%arg0: i32, %arg1: memref<16x128xf32, #tpu.memory_space<vmem>>, %arg2: memref<16x128xf32, #tpu.memory_space<vmem>>, %arg3: memref<128x128xf32, #tpu.memory_space<vmem>>, %arg4: memref<1x128xf32, #tpu.memory_space<vmem>>, %arg5: memref<16x128xf32, #tpu.memory_space<vmem>>) attributes {dimension_semantics = [#tpu.dimension_semantics<parallel>], iteration_bounds = array<i64: 1>, scalar_prefetch = 0 : i64, scratch_operands = 0 : i64, tpu.core_type = #tpu.core_type<tc>, window_params = [{transform_indices = @transform_0, window_bounds = array<i64: 16, 128>}, {transform_indices = @transform_1, window_bounds = array<i64: 16, 128>}, {pipeline_mode = #tpu.pipeline_mode<synchronous>, transform_indices = @transform_2, window_bounds = array<i64: 128, 128>}, {pipeline_mode = #tpu.pipeline_mode<synchronous>, transform_indices = @transform_3, window_bounds = array<i64: 1, 128>}, {transform_indices = @transform_4, window_bounds = array<i64: 16, 128>}]} {
    %c0 = arith.constant 0 : index
    %c0_0 = arith.constant 0 : index
    %0 = vector.load %arg1[%c0, %c0_0] : memref<16x128xf32, #tpu.memory_space<vmem>>, vector<16x128xf32>
    %c0_1 = arith.constant 0 : index
    %c0_2 = arith.constant 0 : index
    %1 = vector.load %arg2[%c0_1, %c0_2] : memref<16x128xf32, #tpu.memory_space<vmem>>, vector<16x128xf32>
    %2 = arith.mulf %0, %1 : vector<16x128xf32>
    %c0_3 = arith.constant 0 : index
    %c0_4 = arith.constant 0 : index
    %3 = vector.load %arg3[%c0_3, %c0_4] : memref<128x128xf32, #tpu.memory_space<vmem>>, vector<128x128xf32>
    %cst = arith.constant dense<0.000000e+00> : vector<16x128xf32>
    %4 = tpu.matmul %2, %3, %cst {dimension_numbers = #tpu.dot_dimension_numbers<[1], [0], [0], [1], [0, 0, 1, 1], [], []>} : vector<16x128xf32>, vector<128x128xf32>, vector<16x128xf32> -> vector<16x128xf32>
    %c0_5 = arith.constant 0 : index
    %c0_6 = arith.constant 0 : index
    %5 = vector.load %arg4[%c0_5, %c0_6] : memref<1x128xf32, #tpu.memory_space<vmem>>, vector<1x128xf32>
    %6 = vector.broadcast %5 : vector<1x128xf32> to vector<16x128xf32>
    %7 = arith.addf %4, %6 : vector<16x128xf32>
    %8 = arith.negf %7 : vector<16x128xf32>
    %9 = math.exp %8 : vector<16x128xf32>
    %cst_7 = arith.constant 1.000000e+00 : f32
    %10 = vector.broadcast %cst_7 : f32 to vector<16x128xf32>
    %11 = arith.addf %10, %9 : vector<16x128xf32>
    %12 = arith.divf %10, %11 : vector<16x128xf32>
    %c0_8 = arith.constant 0 : index
    %c0_9 = arith.constant 0 : index
    %13 = vector.load %arg5[%c0_8, %c0_9] : memref<16x128xf32, #tpu.memory_space<vmem>>, vector<16x128xf32>
    tpu.vector_store %arg5[%c0_8, %c0_9], %12 {strides = array<i32>} : memref<16x128xf32, #tpu.memory_space<vmem>>, vector<16x128xf32>,
    return
  }
  func.func @transform_0(%arg0: i32) -> (i32, i32) {
    %c0_i32 = arith.constant 0 : i32
    %c0_i32_0 = arith.constant 0 : i32
    return %arg0, %c0_i32 : i32, i32
  }
  func.func @transform_1(%arg0: i32) -> (i32, i32) {
    %c0_i32 = arith.constant 0 : i32
    %c0_i32_0 = arith.constant 0 : i32
    return %arg0, %c0_i32 : i32, i32
  }
  func.func @transform_2(%arg0: i32) -> (i32, i32) {
    %c0_i32 = arith.constant 0 : i32
    %c0_i32_0 = arith.constant 0 : i32
    %c0_i32_1 = arith.constant 0 : i32
    return %c0_i32, %c0_i32_0 : i32, i32
  }
  func.func @transform_3(%arg0: i32) -> (i32, i32) {
    %c0_i32 = arith.constant 0 : i32
    %c0_i32_0 = arith.constant 0 : i32
    %c0_i32_1 = arith.constant 0 : i32
    return %c0_i32, %c0_i32_0 : i32, i32
  }
  func.func @transform_4(%arg0: i32) -> (i32, i32) {
    %c0_i32 = arith.constant 0 : i32
    %c0_i32_0 = arith.constant 0 : i32
    return %arg0, %c0_i32 : i32, i32
  }
}

</mosaic_0001>

<llo_original>
// kernel: mpdp_forward.4
$region0: #{mpdp_forward.4}
  #allocation0 [shape = 'u32[]', space=smem, size = 0x4, offset = 0x4, fixed_abs, tag = 'smem constant byte address 0x4 - core index']
  #allocation1 [shape = 'u32[144,128]{1,0:T(1,128)}', space=vmem, size = 0x12000, scoped, tag = 'internal scratch']
  %s0 = inlined_call_operand.vmem [shape: f32[8,128], index: 0, kind: input, shape index: {}]
  %s1 = inlined_call_operand.vmem [shape: f32[128,128], index: 1, kind: input, shape index: {}]
  %s2 = inlined_call_operand.vmem [shape: f32[1,128], index: 2, kind: input, shape index: {}]
  %s3 = inlined_call_operand.vmem [shape: f32[8,128], index: 3, kind: output, shape index: {}]
  %s4 = sld [smem:[#allocation0]]
  $region22: #{mpdp_forward.4} parent=0
    _
  %s6 = ssub.s32 1, %s4
  %s7 = scalar_select 0, %s6, %s4
  // Predicated region
  $region2: #{mpdp_forward.4} parent=0 // pred_check
    _
  $region3: #{mpdp_forward.4} parent=0 // pred_check_branch
    %9 = sbr.rel (0) target = $region5
  $region4: #{mpdp_forward.4} parent=0 // pred_region
    _
  $region5: #{mpdp_forward.4} parent=0 // pred_fallthru
    _
  // Predicated region
  $region6: #{mpdp_forward.4} parent=0 // pred_check
    _
  $region7: #{mpdp_forward.4} parent=0 // pred_check_branch
    %11 = sbr.rel (0) target = $region9
  $region8: #{mpdp_forward.4} parent=0 // pred_region
    _
  $region9: #{mpdp_forward.4} parent=0 // pred_fallthru
    _
  // Predicated region
  $region10: #{mpdp_forward.4} parent=0 // pred_check
    _
  $region11: #{mpdp_forward.4} parent=0 // pred_check_branch
    %13 = sbr.rel (0) target = $region13
  $region12: #{mpdp_forward.4} parent=0 // pred_region
    _
  $region13: #{mpdp_forward.4} parent=0 // pred_fallthru
    _
  %v14 = vld [vmem:[%s0] sm:$0xff]
  %v15 = vld [vmem:[%s1] sm:$0xff]
  %v16 = vld [vmem:[%s1 + $0x8] sm:$0xff]
  %v17 = vld [vmem:[%s1 + $0x10] sm:$0xff]
  %v18 = vld [vmem:[%s1 + $0x18] sm:$0xff]
  %v19 = vld [vmem:[%s1 + $0x20] sm:$0xff]
  %v20 = vld [vmem:[%s1 + $0x28] sm:$0xff]
  %v21 = vld [vmem:[%s1 + $0x30] sm:$0xff]
  %v22 = vld [vmem:[%s1 + $0x38] sm:$0xff]
  %v23 = vld [vmem:[%s1 + $0x40] sm:$0xff]
  %v24 = vld [vmem:[%s1 + $0x48] sm:$0xff]
  %v25 = vld [vmem:[%s1 + $0x50] sm:$0xff]
  %v26 = vld [vmem:[%s1 + $0x58] sm:$0xff]
  %v27 = vld [vmem:[%s1 + $0x60] sm:$0xff]
  %v28 = vld [vmem:[%s1 + $0x68] sm:$0xff]
  %v29 = vld [vmem:[%s1 + $0x70] sm:$0xff]
  %v30 = vld [vmem:[%s1 + $0x78] sm:$0xff]
  %v31 = vld [vmem:[%s2] sm:$0x1]
  %v33 = vlaneseq
  %v34 = vshrl.u32 %v33, 7
  %v35 = vsub.s32 0, %v34
  %v36 = vrot.slane %v31, %v35
  %38 = vmatprep.subr.mxu0 0.0
  %39 = vmatpush1.msra.mxu0 %v15
  %40 = vmatprep.subr.mxu0 0.0
  %41 = vmatpush1.msra.mxu0 %v16
  %42 = vmatprep.subr.mxu0 0.0
  %43 = vmatpush1.msra.mxu0 %v17
  %44 = vmatprep.subr.mxu0 0.0
  %45 = vmatpush1.msra.mxu0 %v18
  %46 = vmatprep.subr.mxu0 0.0
  %47 = vmatpush1.msra.mxu0 %v19
  %48 = vmatprep.subr.mxu0 0.0
  %49 = vmatpush1.msra.mxu0 %v20
  %50 = vmatprep.subr.mxu0 0.0
  %51 = vmatpush1.msra.mxu0 %v21
  %52 = vmatprep.subr.mxu0 0.0
  %53 = vmatpush1.msra.mxu0 %v22
  %54 = vmatprep.subr.mxu0 0.0
  %55 = vmatpush1.msra.mxu0 %v23
  %56 = vmatprep.subr.mxu0 0.0
  %57 = vmatpush1.msra.mxu0 %v24
  %58 = vmatprep.subr.mxu0 0.0
  %59 = vmatpush1.msra.mxu0 %v25
  %60 = vmatprep.subr.mxu0 0.0
  %61 = vmatpush1.msra.mxu0 %v26
  %62 = vmatprep.subr.mxu0 0.0
  %63 = vmatpush1.msra.mxu0 %v27
  %64 = vmatprep.subr.mxu0 0.0
  %65 = vmatpush1.msra.mxu0 %v28
  %66 = vmatprep.subr.mxu0 0.0
  %67 = vmatpush1.msra.mxu0 %v29
  %68 = vmatprep.subr.mxu0 0.0
  %69 = vmatpush1.msra.mxu0 %v30
  %70 = vmatprep.subr.mxu0 0.0
  %71 = vmatpush1.msra.mxu0 0.0
  %72 = vmatprep.subr.mxu0 0.0
  %73 = vmatpush1.msra.mxu0 0.0
  %74 = vmatprep.subr.mxu0 0.0
  %75 = vmatpush1.msra.mxu0 0.0
  %76 = vmatprep.subr.mxu0 0.0
  %77 = vmatpush1.msra.mxu0 0.0
  %78 = vmatprep.subr.mxu0 0.0
  %79 = vmatpush1.msra.mxu0 0.0
  %80 = vmatprep.subr.mxu0 0.0
  %81 = vmatpush1.msra.mxu0 0.0
  %82 = vmatprep.subr.mxu0 0.0
  %83 = vmatpush1.msra.mxu0 0.0
  %84 = vmatprep.subr.mxu0 0.0
  %85 = vmatpush1.msra.mxu0 0.0
  %86 = vmatprep.subr.mxu0 0.0
  %87 = vmatpush1.msra.mxu0 0.0
  %88 = vmatprep.subr.mxu0 0.0
  %89 = vmatpush1.msra.mxu0 0.0
  %90 = vmatprep.subr.mxu0 0.0
  %91 = vmatpush1.msra.mxu0 0.0
  %92 = vmatprep.subr.mxu0 0.0
  %93 = vmatpush1.msra.mxu0 0.0
  %94 = vmatprep.subr.mxu0 0.0
  %95 = vmatpush1.msra.mxu0 0.0
  %96 = vmatprep.subr.mxu0 0.0
  %97 = vmatpush1.msra.mxu0 0.0
  %98 = vmatprep.subr.mxu0 0.0
  %99 = vmatpush1.msra.mxu0 0.0
  %100 = vmatprep.subr.mxu0 0.0
  %101 = vmatpush1.msra.mxu0 0.0
  %102 = vmatprep.mubr.f32.mxu0 0.0
  %103 = vmatmul.mubr.f32.gmra.mrb[0].mxu0 %v14
  %v104 = vpop.f32.mrb[0].mxu0
  %v105 = vadd.f32 %v36, %v104
  %v106 = vpop.f32.mrb[0].mxu0
  %107 = vdwg.mxu0
  %v108 = vmax.f32 %v105, 0.0
  %109 = vst [vmem:[%s3] sm:$0xff] %v108
  // Predicated region
  $region14: #{mpdp_forward.4} parent=0 // pred_check
    _
  $region15: #{mpdp_forward.4} parent=0 // pred_check_branch
    %111 = sbr.rel (0) target = $region17
  $region16: #{mpdp_forward.4} parent=0 // pred_region
    _
  $region17: #{mpdp_forward.4} parent=0 // pred_fallthru
    _
  // Predicated region
  $region18: #{mpdp_forward.4} parent=0 // pred_check
    _
  $region19: #{mpdp_forward.4} parent=0 // pred_check_branch
    %113 = sbr.rel (0) target = $region21
  $region20: #{mpdp_forward.4} parent=0 // pred_region
    _
  $region21: #{mpdp_forward.4} parent=0 // pred_fallthru
    _

// kernel: mpdp_forward.5
$region0: #{mpdp_forward.5}
  #allocation0 [shape = 'u32[]', space=smem, size = 0x4, offset = 0x4, fixed_abs, tag = 'smem constant byte address 0x4 - core index']
  #allocation1 [shape = 'u32[144,128]{1,0:T(1,128)}', space=vmem, size = 0x12000, scoped, tag = 'internal scratch']
  %s0 = inlined_call_operand.vmem [shape: f32[16,128], index: 0, kind: input, shape index: {}]
  %s1 = inlined_call_operand.vmem [shape: f32[16,128], index: 1, kind: input, shape index: {}]
  %s2 = inlined_call_operand.vmem [shape: f32[128,128], index: 2, kind: input, shape index: {}]
  %s3 = inlined_call_operand.vmem [shape: f32[1,128], index: 3, kind: input, shape index: {}]
  %s4 = inlined_call_operand.vmem [shape: f32[16,128], index: 4, kind: output, shape index: {}]
  %s5 = sld [smem:[#allocation0]]
  $region26: #{mpdp_forward.5} parent=0
    _
  %s7 = ssub.s32 1, %s5
  %s8 = scalar_select 0, %s7, %s5
  // Predicated region
  $region2: #{mpdp_forward.5} parent=0 // pred_check
    _
  $region3: #{mpdp_forward.5} parent=0 // pred_check_branch
    %10 = sbr.rel (0) target = $region5
  $region4: #{mpdp_forward.5} parent=0 // pred_region
    _
  $region5: #{mpdp_forward.5} parent=0 // pred_fallthru
    _
  // Predicated region
  $region6: #{mpdp_forward.5} parent=0 // pred_check
    _
  $region7: #{mpdp_forward.5} parent=0 // pred_check_branch
    %12 = sbr.rel (0) target = $region9
  $region8: #{mpdp_forward.5} parent=0 // pred_region
    _
  $region9: #{mpdp_forward.5} parent=0 // pred_fallthru
    _
  // Predicated region
  $region10: #{mpdp_forward.5} parent=0 // pred_check
    _
  $region11: #{mpdp_forward.5} parent=0 // pred_check_branch
    %14 = sbr.rel (0) target = $region13
  $region12: #{mpdp_forward.5} parent=0 // pred_region
    _
  $region13: #{mpdp_forward.5} parent=0 // pred_fallthru
    _
  // Predicated region
  $region14: #{mpdp_forward.5} parent=0 // pred_check
    _
  $region15: #{mpdp_forward.5} parent=0 // pred_check_branch
    %16 = sbr.rel (0) target = $region17
  $region16: #{mpdp_forward.5} parent=0 // pred_region
    _
  $region17: #{mpdp_forward.5} parent=0 // pred_fallthru
    _
  %v17 = vld [vmem:[%s0] sm:$0xff]
  %v18 = vld [vmem:[%s0 + $0x8] sm:$0xff]
  %v19 = vld [vmem:[%s1] sm:$0xff]
  %v20 = vld [vmem:[%s1 + $0x8] sm:$0xff]
  %v21 = vmul.f32 %v17, %v19
  %v22 = vmul.f32 %v18, %v20
  %v23 = vld [vmem:[%s2] sm:$0xff]
  %v24 = vld [vmem:[%s2 + $0x8] sm:$0xff]
  %v25 = vld [vmem:[%s2 + $0x10] sm:$0xff]
  %v26 = vld [vmem:[%s2 + $0x18] sm:$0xff]
  %v27 = vld [vmem:[%s2 + $0x20] sm:$0xff]
  %v28 = vld [vmem:[%s2 + $0x28] sm:$0xff]
  %v29 = vld [vmem:[%s2 + $0x30] sm:$0xff]
  %v30 = vld [vmem:[%s2 + $0x38] sm:$0xff]
  %v31 = vld [vmem:[%s2 + $0x40] sm:$0xff]
  %v32 = vld [vmem:[%s2 + $0x48] sm:$0xff]
  %v33 = vld [vmem:[%s2 + $0x50] sm:$0xff]
  %v34 = vld [vmem:[%s2 + $0x58] sm:$0xff]
  %v35 = vld [vmem:[%s2 + $0x60] sm:$0xff]
  %v36 = vld [vmem:[%s2 + $0x68] sm:$0xff]
  %v37 = vld [vmem:[%s2 + $0x70] sm:$0xff]
  %v38 = vld [vmem:[%s2 + $0x78] sm:$0xff]
  %v39 = vld [vmem:[%s3] sm:$0x1]
  %v41 = vlaneseq
  %v42 = vshrl.u32 %v41, 7
  %v43 = vsub.s32 0, %v42
  %v44 = vrot.slane %v39, %v43
  %46 = vmatprep.subr.mxu0 0.0
  %47 = vmatpush1.msra.mxu0 %v23
  %48 = vmatprep.subr.mxu0 0.0
  %49 = vmatpush1.msra.mxu0 %v24
  %50 = vmatprep.subr.mxu0 0.0
  %51 = vmatpush1.msra.mxu0 %v25
  %52 = vmatprep.subr.mxu0 0.0
  %53 = vmatpush1.msra.mxu0 %v26
  %54 = vmatprep.subr.mxu0 0.0
  %55 = vmatpush1.msra.mxu0 %v27
  %56 = vmatprep.subr.mxu0 0.0
  %57 = vmatpush1.msra.mxu0 %v28
  %58 = vmatprep.subr.mxu0 0.0
  %59 = vmatpush1.msra.mxu0 %v29
  %60 = vmatprep.subr.mxu0 0.0
  %61 = vmatpush1.msra.mxu0 %v30
  %62 = vmatprep.subr.mxu0 0.0
  %63 = vmatpush1.msra.mxu0 %v31
  %64 = vmatprep.subr.mxu0 0.0
  %65 = vmatpush1.msra.mxu0 %v32
  %66 = vmatprep.subr.mxu0 0.0
  %67 = vmatpush1.msra.mxu0 %v33
  %68 = vmatprep.subr.mxu0 0.0
  %69 = vmatpush1.msra.mxu0 %v34
  %70 = vmatprep.subr.mxu0 0.0
  %71 = vmatpush1.msra.mxu0 %v35
  %72 = vmatprep.subr.mxu0 0.0
  %73 = vmatpush1.msra.mxu0 %v36
  %74 = vmatprep.subr.mxu0 0.0
  %75 = vmatpush1.msra.mxu0 %v37
  %76 = vmatprep.subr.mxu0 0.0
  %77 = vmatpush1.msra.mxu0 %v38
  %78 = vmatprep.subr.mxu0 0.0
  %79 = vmatpush1.msra.mxu0 0.0
  %80 = vmatprep.subr.mxu0 0.0
  %81 = vmatpush1.msra.mxu0 0.0
  %82 = vmatprep.subr.mxu0 0.0
  %83 = vmatpush1.msra.mxu0 0.0
  %84 = vmatprep.subr.mxu0 0.0
  %85 = vmatpush1.msra.mxu0 0.0
  %86 = vmatprep.subr.mxu0 0.0
  %87 = vmatpush1.msra.mxu0 0.0
  %88 = vmatprep.subr.mxu0 0.0
  %89 = vmatpush1.msra.mxu0 0.0
  %90 = vmatprep.subr.mxu0 0.0
  %91 = vmatpush1.msra.mxu0 0.0
  %92 = vmatprep.subr.mxu0 0.0
  %93 = vmatpush1.msra.mxu0 0.0
  %94 = vmatprep.subr.mxu0 0.0
  %95 = vmatpush1.msra.mxu0 0.0
  %96 = vmatprep.subr.mxu0 0.0
  %97 = vmatpush1.msra.mxu0 0.0
  %98 = vmatprep.subr.mxu0 0.0
  %99 = vmatpush1.msra.mxu0 0.0
  %100 = vmatprep.subr.mxu0 0.0
  %101 = vmatpush1.msra.mxu0 0.0
  %102 = vmatprep.subr.mxu0 0.0
  %103 = vmatpush1.msra.mxu0 0.0
  %104 = vmatprep.subr.mxu0 0.0
  %105 = vmatpush1.msra.mxu0 0.0
  %106 = vmatprep.subr.mxu0 0.0
  %107 = vmatpush1.msra.mxu0 0.0
  %108 = vmatprep.subr.mxu0 0.0
  %109 = vmatpush1.msra.mxu0 0.0
  %110 = vmatprep.mubr.f32.mxu0 0.0
  %111 = vmatmul.mubr.f32.gmra.mrb[0].mxu0 %v21
  %v112 = vpop.f32.mrb[0].mxu0
  %v113 = vadd.f32 %v44, %v112
  %v114 = vpop.f32.mrb[0].mxu0
  %115 = vmatprep.mubr.f32.mxu0 0.0
  %116 = vmatmul.mubr.f32.gmra.mrb[0].mxu0 %v22
  %v117 = vpop.f32.mrb[0].mxu0
  %v118 = vadd.f32 %v44, %v117
  %v119 = vpop.f32.mrb[0].mxu0
  %120 = vdwg.mxu0
  %v121 = vxor.u32 %v113, 2147483648
  %v122 = vxor.u32 %v118, 2147483648
  %v123 = vmul.f32 %v121, 1.442695
  %v124 = vpow.pop %v123
  %v125 = vmul.f32 %v122, 1.442695
  %v126 = vpow.pop %v125
  %v127 = vadd.f32 %v124, 1.0
  %v128 = vadd.f32 %v126, 1.0
  %v129 = vrcp.pop %v127
  %v130 = vmul.f32 1.0, %v129
  %v131 = vrcp.pop %v128
  %v132 = vmul.f32 1.0, %v131
  %133 = vst [vmem:[%s4] sm:$0xff] %v130
  %134 = vst [vmem:[%s4 + $0x8] sm:$0xff] %v132
  // Predicated region
  $region18: #{mpdp_forward.5} parent=0 // pred_check
    _
  $region19: #{mpdp_forward.5} parent=0 // pred_check_branch
    %136 = sbr.rel (0) target = $region21
  $region20: #{mpdp_forward.5} parent=0 // pred_region
    _
  $region21: #{mpdp_forward.5} parent=0 // pred_fallthru
    _
  // Predicated region
  $region22: #{mpdp_forward.5} parent=0 // pred_check
    _
  $region23: #{mpdp_forward.5} parent=0 // pred_check_branch
    %138 = sbr.rel (0) target = $region25
  $region24: #{mpdp_forward.5} parent=0 // pred_region
    _
  $region25: #{mpdp_forward.5} parent=0 // pred_fallthru
    _

</llo_original>
